<compile_context>
chip_gen: v7x
topology: tpu7x:2x2x1
jax: 0.10.0
libtpu: 0.0.40
codegen_flags: <defaults>
</compile_context>

<pallas_src>
import numpy as np
import jax
import jax.numpy as jnp
from jax.experimental import pallas as pl
from jax.experimental.pallas import tpu as pltpu


# ----------------------------- small helpers -----------------------------
def _round_up(x: int, m: int) -> int:
    return ((x + m - 1) // m) * m


def _pick_tile(total: int, pref: int, mult: int) -> int:
    """Largest multiple of `mult` that divides `total` and is <= pref (fallback: total)."""
    t = max((pref // mult) * mult, mult)
    while t >= mult:
        if total % t == 0 and t <= total:
            return t
        t -= mult
    return total


# ----------------------- host-side constant construction -----------------------
def norm_cm(B: int) -> np.ndarray:
    m = np.arange(-(B - 1), B, dtype=np.int64)
    sign = np.where(m % 2 == 0, 1.0, -1.0).astype(np.float64)
    return sign * np.sqrt(2.0 * np.pi)


def idct_matrix(N: int) -> np.ndarray:
    kk, nn = np.meshgrid(np.arange(N, dtype=np.float64),
                         np.arange(N, dtype=np.float64), indexing="ij")
    DI = np.cos(np.pi * nn * (kk + 0.5) / N)
    DI[:, 0] *= np.sqrt(1.0 / N)
    DI[:, 1:] *= np.sqrt(2.0 / N)
    return DI


def idst_matrix(N: int) -> np.ndarray:
    kk, nn = np.meshgrid(np.arange(N, dtype=np.float64),
                         np.arange(N, dtype=np.float64), indexing="ij")
    DI = np.sin(np.pi * (nn + 1) * (kk + 0.5) / N)
    DI[:, N - 1] *= np.sqrt(1.0 / N)
    DI[:, : N - 1] *= np.sqrt(2.0 / N)
    return DI


def build_idlt_constants(L: int, key, weight_dtype=jnp.float32):
    """Build constants and host-fuse the whole linear chain into one weight W2.

    weight_dtype: jnp.float32 (default, max accuracy) or jnp.bfloat16 (recommended
    on v6e/v7x for MXU throughput; accumulation stays f32 inside the kernel).
    """
    twoL = 2 * L
    M = 2 * L - 1

    idct_T = idct_matrix(twoL).T          # 'ic' transform applied to rows
    idst_T = idst_matrix(twoL).T          # 'is' transform applied to rows

    # index parity selection (matches the PyTorch buffers cInd / sInd)
    if (L - 1) % 2 == 1:
        c_ind = np.arange(1, M, 2)
        s_ind = np.arange(0, M, 2)
    else:
        s_ind = np.arange(1, M, 2)
        c_ind = np.arange(0, M, 2)

    icm = 1.0 / norm_cm(L)                # (M,)

    # TODO(synk): wigner_d_SHT_weights_half_pi(L) source was not provided;
    # substitute a deterministic synthetic matrix of the correct shape
    # ((2L-1)*L, (2L-1)*2L).  out = Psi_flat @ W reproduces Psi_flat @ DT.T.
    W = np.asarray(jax.random.normal(key, (M * L, M * twoL), dtype=jnp.float32),
                   dtype=np.float64)

    # ---- host-side fusion (double precision, no dense block-diagonal) ----
    # W2[k, m*2L:(m+1)*2L] = icm[m] * (W[k, m*2L:(m+1)*2L] @ idXt_T)
    W3 = W.reshape(M * L, M, twoL)
    W3f = W3.copy()
    W3f[:, c_ind, :] = np.einsum("kmn,nj->kmj", W3[:, c_ind, :], idct_T)
    W3f[:, s_ind, :] = np.einsum("kmn,nj->kmj", W3[:, s_ind, :], idst_T)
    W3f *= icm[None, :, None]
    W2 = W3f.reshape(M * L, M * twoL)

    # lane-dense zero-padding of the fused weight (K and N up to multiples of 128)
    K, N = M * L, M * twoL
    K_pad, N_pad = _round_up(K, 128), _round_up(N, 128)
    W2_pad = np.zeros((K_pad, N_pad), dtype=np.float64)
    W2_pad[:K, :N] = W2

    return dict(
        w2=jnp.asarray(W2_pad, dtype=weight_dtype),      # (K_pad, N_pad) fused weight
        # unfused pieces kept only for the pure-JAX reference check:
        w=jnp.asarray(W, dtype=jnp.float32),
        idct_T=jnp.asarray(idct_T, dtype=jnp.float32),
        idst_T=jnp.asarray(idst_T, dtype=jnp.float32),
        icm=jnp.asarray(icm, dtype=jnp.float32),
        c_ind=c_ind, s_ind=s_ind,
        K=K, N=N, K_pad=K_pad, N_pad=N_pad,
    )


# --------------------------------- Pallas kernel --------------------------------
def idlt_kernel(psi_ref, w_ref, out_ref):
    # Single MXU matmul; f32 accumulation regardless of weight dtype.
    out_ref[...] = jnp.dot(
        psi_ref[...].astype(w_ref.dtype), w_ref[...],
        preferred_element_type=jnp.float32,
    ).astype(out_ref.dtype)


def idlt_forward(psi, consts, L, *, batch_tile=256, n_tile=512):
    """out = IDLT(Psi) via a single fused-weight matmul, tiled over (batch, N)."""
    b = psi.shape[0]
    M, twoL = 2 * L - 1, 2 * L
    K, N = consts["K"], consts["N"]
    K_pad, N_pad = consts["K_pad"], consts["N_pad"]
    w2 = consts["w2"]

    psi_flat = psi.reshape(b, K)
    if K_pad != K:                                    # zero-pad contraction dim (lane-dense)
        psi_flat = jnp.pad(psi_flat, ((0, 0), (0, K_pad - K)))

    # batch tile: multiple of 8, capped by batch_tile; pad batch so TB divides it
    TB = min(batch_tile, _round_up(b, 8))
    b_pad = _round_up(b, TB)
    if b_pad != b:
        psi_flat = jnp.pad(psi_flat, ((0, b_pad - b), (0, 0)))

    # output-column tile: multiple of 128 dividing N_pad (keeps weight tile in VMEM)
    TN = _pick_tile(N_pad, n_tile, 128)

    grid = (b_pad // TB, N_pad // TN)

    out_flat = pl.pallas_call(
        idlt_kernel,
        out_shape=jax.ShapeDtypeStruct((b_pad, N_pad), jnp.float32),
        grid=grid,
        in_specs=[
            pl.BlockSpec((TB, K_pad), lambda i, j: (i, 0)),   # Psi tile, streamed over batch
            pl.BlockSpec((K_pad, TN), lambda i, j: (0, j)),   # fused weight, resident over batch
        ],
        out_specs=pl.BlockSpec((TB, TN), lambda i, j: (i, j)),
        compiler_params=pltpu.CompilerParams(
            dimension_semantics=("parallel", "parallel")),
    )(psi_flat, w2)

    return out_flat[:b, :N].reshape(b, M, twoL)


# ---------------------------- pure-JAX reference (torch semantics) --------------
def idlt_reference(psi, consts, L):
    b = psi.shape[0]
    M, twoL = 2 * L - 1, 2 * L
    psi_flat = psi.reshape(b, M * L)
    psi_hat = (psi_flat @ consts["w"]).reshape(b, M, twoL)
    psi_hat = psi_hat.at[:, consts["c_ind"], :].set(
        psi_hat[:, consts["c_ind"], :] @ consts["idct_T"])
    psi_hat = psi_hat.at[:, consts["s_ind"], :].set(
        psi_hat[:, consts["s_ind"], :] @ consts["idst_T"])
    return consts["icm"][None, :, None] * psi_hat


# ------------------------------------- main --------------------------------------
if __name__ == "__main__":
    L = 8           # bandlimit
    b = 8           # batch (small test shape; production batches should be >=128)
    M = 2 * L - 1   # 15

    key = jax.random.PRNGKey(0)
    k_psi, k_w = jax.random.split(key)

    psi = jax.random.normal(k_psi, (b, M, L), dtype=jnp.float32)
    consts = build_idlt_constants(L, k_w, weight_dtype=jnp.float32)

    out = idlt_forward(psi, consts, L)
    out = jax.block_until_ready(out)

    ref = idlt_reference(psi, consts, L)
    assert out.shape == (b, M, 2 * L), out.shape
    np.testing.assert_allclose(np.asarray(out), np.asarray(ref),
                               rtol=1e-3, atol=1e-3)
    print("KERNEL_OK")
</pallas_src>

<mosaic_0001>
module attributes {stable_mosaic.version = 11 : i64} {
  func.func @idlt_kernel(%arg0: i32, %arg1: i32, %arg2: memref<8x128xf32, #tpu.memory_space<vmem>>, %arg3: memref<128x256xf32, #tpu.memory_space<vmem>>, %arg4: memref<8x256xf32, #tpu.memory_space<vmem>>) attributes {dimension_semantics = [#tpu.dimension_semantics<parallel>, #tpu.dimension_semantics<parallel>], iteration_bounds = array<i64: 1, 1>, scalar_prefetch = 0 : i64, scratch_operands = 0 : i64, tpu.core_type = #tpu.core_type<tc>, window_params = [{transform_indices = @transform_0, window_bounds = array<i64: 8, 128>}, {transform_indices = @transform_1, window_bounds = array<i64: 128, 256>}, {transform_indices = @transform_2, window_bounds = array<i64: 8, 256>}]} {
    %c0 = arith.constant 0 : index
    %c0_0 = arith.constant 0 : index
    %0 = vector.load %arg2[%c0, %c0_0] : memref<8x128xf32, #tpu.memory_space<vmem>>, vector<8x128xf32>
    %c0_1 = arith.constant 0 : index
    %c0_2 = arith.constant 0 : index
    %1 = vector.load %arg3[%c0_1, %c0_2] : memref<128x256xf32, #tpu.memory_space<vmem>>, vector<128x256xf32>
    %cst = arith.constant dense<0.000000e+00> : vector<8x256xf32>
    %2 = tpu.matmul %0, %1, %cst {dimension_numbers = #tpu.dot_dimension_numbers<[1], [0], [0], [1], [0, 0, 1, 1], [], []>} : vector<8x128xf32>, vector<128x256xf32>, vector<8x256xf32> -> vector<8x256xf32>
    %c0_3 = arith.constant 0 : index
    %c0_4 = arith.constant 0 : index
    %3 = vector.load %arg4[%c0_3, %c0_4] : memref<8x256xf32, #tpu.memory_space<vmem>>, vector<8x256xf32>
    tpu.vector_store %arg4[%c0_3, %c0_4], %2 {strides = array<i32>} : memref<8x256xf32, #tpu.memory_space<vmem>>, vector<8x256xf32>,
    return
  }
  func.func @transform_0(%arg0: i32, %arg1: i32) -> (i32, i32) {
    %c0_i32 = arith.constant 0 : i32
    %c0_i32_0 = arith.constant 0 : i32
    return %arg0, %c0_i32 : i32, i32
  }
  func.func @transform_1(%arg0: i32, %arg1: i32) -> (i32, i32) {
    %c0_i32 = arith.constant 0 : i32
    %c0_i32_0 = arith.constant 0 : i32
    return %c0_i32, %arg1 : i32, i32
  }
  func.func @transform_2(%arg0: i32, %arg1: i32) -> (i32, i32) {
    %c0_i32 = arith.constant 0 : i32
    return %arg0, %arg1 : i32, i32
  }
}

</mosaic_0001>

<llo_original>
// kernel: tpu_custom_call.1
$region0: #{tpu_custom_call.1}
  #allocation0 [shape = 'u32[]', space=smem, size = 0x4, offset = 0x4, fixed_abs, tag = 'smem constant byte address 0x4 - core index']
  #allocation1 [shape = 'u32[144,128]{1,0:T(1,128)}', space=vmem, size = 0x12000, scoped, tag = 'internal scratch']
  %s0 = inlined_call_operand.hbm [shape: f32[8,128], index: 0, kind: input, shape index: {}]
  %s1 = inlined_call_operand.hbm [shape: f32[128,256], index: 1, kind: input, shape index: {}]
  %s2 = inlined_call_operand.hbm [shape: f32[8,256], index: 2, kind: output, shape index: {}]
  %s3 = sld [smem:[#allocation0]]
  $region26: #{tpu_custom_call.1} parent=0
    _
  %s5 = ssub.s32 1, %s3
  %s6 = scalar_select 0, %s5, %s3
  $region1: #{tpu_custom_call.1} parent=0
    #allocation2 [shape = 'u8[4096]{0}', space=vmem, size = 0x1000, scoped, tag = 'input window, operand 0, single buffered']
    #allocation3 [shape = 's32[1]{0}', space=sflag, size = 0x4, scoped, tag = 'scoped memory for tpu_custom_call.1']
    #allocation4 [shape = 's32[1]{0}', space=sflag, size = 0x4, scoped, tag = 'scoped memory for tpu_custom_call.1']
    #allocation5 [shape = 'u8[131072]{0}', space=vmem, size = 0x20000, scoped, tag = 'input window, operand 1, single buffered']
    #allocation6 [shape = 's32[1]{0}', space=sflag, size = 0x4, scoped, tag = 'scoped memory for tpu_custom_call.1']
    #allocation7 [shape = 'u8[8192]{0}', space=vmem, size = 0x2000, scoped, tag = 'output window, operand 0, single buffered']
    %7 = vsyncpa [#allocation3], 0
    %8 = vsyncpa [#allocation6], 0
    %9 = vsyncpa [#allocation4], 0
    // Predicated region
    $region2: #{tpu_custom_call.1} parent=1 // pred_check
      _
    $region3: #{tpu_custom_call.1} parent=1 // pred_check_branch
      %11 = sbr.rel (0) target = $region5
    $region4: #{tpu_custom_call.1} parent=1 // pred_region
      %s13 = ssub.s32 128, 128
      %14 = vsyncadd [#allocation3], %s13
      %s16 = sshll.u32 [#allocation2], 4
      %s17 = int_to_ptr.vmem [resolvable:$true] %s16
      %19 = dma.hbm_to_vmem [thread:$0]  %s0, 128, %s17, [#allocation3]
    $region5: #{tpu_custom_call.1} parent=1 // pred_fallthru
      _
    // Predicated region
    $region6: #{tpu_custom_call.1} parent=1 // pred_check
      _
    $region7: #{tpu_custom_call.1} parent=1 // pred_check_branch
      %21 = sbr.rel (0) target = $region9
    $region8: #{tpu_custom_call.1} parent=1 // pred_region
      %s23 = ssub.s32 4096, 4096
      %24 = vsyncadd [#allocation6], %s23
      %s25 = sshll.u32 [#allocation5], 4
      %s26 = int_to_ptr.vmem [resolvable:$true] %s25
      %31 = dma.hbm_to_vmem [thread:$0]  %s1, 4096, %s26, [#allocation6], 256, 256, 16
    $region9: #{tpu_custom_call.1} parent=1 // pred_fallthru
      _
    // Predicated region
    $region10: #{tpu_custom_call.1} parent=1 // pred_check
      _
    $region11: #{tpu_custom_call.1} parent=1 // pred_check_branch
      %33 = sbr.rel (0) target = $region13
    $region12: #{tpu_custom_call.1} parent=1 // pred_region
      %34 = dma.done [#allocation3], 128
    $region13: #{tpu_custom_call.1} parent=1 // pred_fallthru
      _
    // Predicated region
    $region14: #{tpu_custom_call.1} parent=1 // pred_check
      _
    $region15: #{tpu_custom_call.1} parent=1 // pred_check_branch
      %36 = sbr.rel (0) target = $region17
    $region16: #{tpu_custom_call.1} parent=1 // pred_region
      %37 = dma.done [#allocation6], 4096
    $region17: #{tpu_custom_call.1} parent=1 // pred_fallthru
      _
    %v38 = vld [vmem:[#allocation2] sm:$0xff]
    %v39 = vld [vmem:[#allocation5] sm:$0xff]
    %v40 = vld [vmem:[#allocation5 + $0x8] sm:$0xff]
    %v41 = vld [vmem:[#allocation5 + $0x10] sm:$0xff]
    %v42 = vld [vmem:[#allocation5 + $0x18] sm:$0xff]
    %v43 = vld [vmem:[#allocation5 + $0x20] sm:$0xff]
    %v44 = vld [vmem:[#allocation5 + $0x28] sm:$0xff]
    %v45 = vld [vmem:[#allocation5 + $0x30] sm:$0xff]
    %v46 = vld [vmem:[#allocation5 + $0x38] sm:$0xff]
    %v47 = vld [vmem:[#allocation5 + $0x40] sm:$0xff]
    %v48 = vld [vmem:[#allocation5 + $0x48] sm:$0xff]
    %v49 = vld [vmem:[#allocation5 + $0x50] sm:$0xff]
    %v50 = vld [vmem:[#allocation5 + $0x58] sm:$0xff]
    %v51 = vld [vmem:[#allocation5 + $0x60] sm:$0xff]
    %v52 = vld [vmem:[#allocation5 + $0x68] sm:$0xff]
    %v53 = vld [vmem:[#allocation5 + $0x70] sm:$0xff]
    %v54 = vld [vmem:[#allocation5 + $0x78] sm:$0xff]
    %v55 = vld [vmem:[#allocation5 + $0x80] sm:$0xff]
    %v56 = vld [vmem:[#allocation5 + $0x88] sm:$0xff]
    %v57 = vld [vmem:[#allocation5 + $0x90] sm:$0xff]
    %v58 = vld [vmem:[#allocation5 + $0x98] sm:$0xff]
    %v59 = vld [vmem:[#allocation5 + $0xa0] sm:$0xff]
    %v60 = vld [vmem:[#allocation5 + $0xa8] sm:$0xff]
    %v61 = vld [vmem:[#allocation5 + $0xb0] sm:$0xff]
    %v62 = vld [vmem:[#allocation5 + $0xb8] sm:$0xff]
    %v63 = vld [vmem:[#allocation5 + $0xc0] sm:$0xff]
    %v64 = vld [vmem:[#allocation5 + $0xc8] sm:$0xff]
    %v65 = vld [vmem:[#allocation5 + $0xd0] sm:$0xff]
    %v66 = vld [vmem:[#allocation5 + $0xd8] sm:$0xff]
    %v67 = vld [vmem:[#allocation5 + $0xe0] sm:$0xff]
    %v68 = vld [vmem:[#allocation5 + $0xe8] sm:$0xff]
    %v69 = vld [vmem:[#allocation5 + $0xf0] sm:$0xff]
    %v70 = vld [vmem:[#allocation5 + $0xf8] sm:$0xff]
    %71 = vmatprep.subr.mxu0 %v40
    %72 = vmatpush1.msra.mxu0 %v39
    %73 = vmatprep.subr.mxu0 %v42
    %74 = vmatpush1.msra.mxu0 %v41
    %75 = vmatprep.subr.mxu0 %v44
    %76 = vmatpush1.msra.mxu0 %v43
    %77 = vmatprep.subr.mxu0 %v46
    %78 = vmatpush1.msra.mxu0 %v45
    %79 = vmatprep.subr.mxu0 %v48
    %80 = vmatpush1.msra.mxu0 %v47
    %81 = vmatprep.subr.mxu0 %v50
    %82 = vmatpush1.msra.mxu0 %v49
    %83 = vmatprep.subr.mxu0 %v52
    %84 = vmatpush1.msra.mxu0 %v51
    %85 = vmatprep.subr.mxu0 %v54
    %86 = vmatpush1.msra.mxu0 %v53
    %87 = vmatprep.subr.mxu0 %v56
    %88 = vmatpush1.msra.mxu0 %v55
    %89 = vmatprep.subr.mxu0 %v58
    %90 = vmatpush1.msra.mxu0 %v57
    %91 = vmatprep.subr.mxu0 %v60
    %92 = vmatpush1.msra.mxu0 %v59
    %93 = vmatprep.subr.mxu0 %v62
    %94 = vmatpush1.msra.mxu0 %v61
    %95 = vmatprep.subr.mxu0 %v64
    %96 = vmatpush1.msra.mxu0 %v63
    %97 = vmatprep.subr.mxu0 %v66
    %98 = vmatpush1.msra.mxu0 %v65
    %99 = vmatprep.subr.mxu0 %v68
    %100 = vmatpush1.msra.mxu0 %v67
    %101 = vmatprep.subr.mxu0 %v70
    %102 = vmatpush1.msra.mxu0 %v69
    %103 = vmatprep.subr.mxu0 0.0
    %104 = vmatpush1.msra.mxu0 0.0
    %105 = vmatprep.subr.mxu0 0.0
    %106 = vmatpush1.msra.mxu0 0.0
    %107 = vmatprep.subr.mxu0 0.0
    %108 = vmatpush1.msra.mxu0 0.0
    %109 = vmatprep.subr.mxu0 0.0
    %110 = vmatpush1.msra.mxu0 0.0
    %111 = vmatprep.subr.mxu0 0.0
    %112 = vmatpush1.msra.mxu0 0.0
    %113 = vmatprep.subr.mxu0 0.0
    %114 = vmatpush1.msra.mxu0 0.0
    %115 = vmatprep.subr.mxu0 0.0
    %116 = vmatpush1.msra.mxu0 0.0
    %117 = vmatprep.subr.mxu0 0.0
    %118 = vmatpush1.msra.mxu0 0.0
    %119 = vmatprep.subr.mxu0 0.0
    %120 = vmatpush1.msra.mxu0 0.0
    %121 = vmatprep.subr.mxu0 0.0
    %122 = vmatpush1.msra.mxu0 0.0
    %123 = vmatprep.subr.mxu0 0.0
    %124 = vmatpush1.msra.mxu0 0.0
    %125 = vmatprep.subr.mxu0 0.0
    %126 = vmatpush1.msra.mxu0 0.0
    %127 = vmatprep.subr.mxu0 0.0
    %128 = vmatpush1.msra.mxu0 0.0
    %129 = vmatprep.subr.mxu0 0.0
    %130 = vmatpush1.msra.mxu0 0.0
    %131 = vmatprep.subr.mxu0 0.0
    %132 = vmatpush1.msra.mxu0 0.0
    %133 = vmatprep.subr.mxu0 0.0
    %134 = vmatpush1.msra.mxu0 0.0
    %135 = vmatprep.mubr.f32.mxu0 0.0
    %136 = vmatmul.mubr.f32.gmra.mrb[0].mxu0 %v38
    %v137 = vpop.f32.mrb[0].mxu0
    %v138 = vadd.f32 0.0, %v137
    %v139 = vpop.f32.mrb[0].mxu0
    %v140 = vadd.f32 0.0, %v139
    %141 = vdwg.mxu0
    %142 = vst [vmem:[#allocation7] sm:$0xff] %v138
    %143 = vst [vmem:[#allocation7 + $0x8] sm:$0xff] %v140
    // Predicated region
    $region18: #{tpu_custom_call.1} parent=1 // pred_check
      _
    $region19: #{tpu_custom_call.1} parent=1 // pred_check_branch
      %145 = sbr.rel (0) target = $region21
    $region20: #{tpu_custom_call.1} parent=1 // pred_region
      %s147 = ssub.s32 256, 256
      %148 = vsyncadd [#allocation4], %s147
      %s150 = sshll.u32 [#allocation7], 4
      %s151 = int_to_ptr.vmem [resolvable:$true] %s150
      %153 = dma.vmem_to_hbm [thread:$0]  %s151, 256, %s2, [#allocation4]
    $region21: #{tpu_custom_call.1} parent=1 // pred_fallthru
      _
    // Predicated region
    $region22: #{tpu_custom_call.1} parent=1 // pred_check
      _
    $region23: #{tpu_custom_call.1} parent=1 // pred_check_branch
      %155 = sbr.rel (0) target = $region25
    $region24: #{tpu_custom_call.1} parent=1 // pred_region
      %156 = dma.done [#allocation4], 256
    $region25: #{tpu_custom_call.1} parent=1 // pred_fallthru
      _
    %157 = vsyncpa [#allocation3], 1
    %158 = vsyncpa [#allocation6], 1
    %159 = vsyncpa [#allocation4], 1

</llo_original>
